<compile_context>
chip_gen: v5e
topology: v5e:2x2
jax: 0.10.0
libtpu: 0.0.40
codegen_flags: <defaults>
</compile_context>

<pallas_src>
import functools

import jax
import jax.numpy as jnp
from jax.experimental import pallas as pl
from jax.experimental.pallas import tpu as pltpu

_MiB = 1024 * 1024


def _round_up(x, m):
    return ((x + m - 1) // m) * m


def _vmem_budget_bytes():
    """~75% of per-core VMEM; falls back to a v7x-safe 64 MiB assumption."""
    cap = 64 * _MiB
    try:
        info = pltpu.get_tpu_info()
        cap = int(getattr(info, "vmem_capacity_bytes", cap))
    except Exception:
        pass
    return (cap * 3) // 4


def _tile_caps(budget):
    # 128 MiB chips (v5e/v6e): large tiles to clear the ~240-656 flops/byte
    # compute-bound thresholds.  64 MiB v7x: half-size tiles already clear its
    # ~311 flops/byte threshold and v6e-sized tiles would blow its VMEM.
    if budget >= 80 * _MiB:
        return 1024, 2048, 512    # tm_cap, tn_cap, tk_cap
    return 512, 1024, 512


def _pick_tile(dim, cap, waste_limit=1.125):
    """Largest lane-aligned tile <= cap whose padding waste stays near minimal."""
    base = _round_up(dim, 128)
    cands = sorted({t for t in (128, 256, 512, 1024, 2048, base) if 128 <= t <= cap})
    best = 128
    for t in cands:
        if _round_up(dim, t) <= base * waste_limit:
            best = t          # ascending scan -> ends on largest acceptable
    return best


# ---------------------------------------------------------------------------
# Kernels
# ---------------------------------------------------------------------------

def _kernel_single_k(x_ref, w_ref, b_ref, o_ref, *, compute_dtype):
    # Fast path: no K reduction -> no accumulator scratch, no pl.when.
    x = x_ref[...].astype(compute_dtype)
    acc = jnp.dot(x, w_ref[...], preferred_element_type=jnp.float32)
    o_ref[...] = jnp.maximum(acc + b_ref[...], 0.0).astype(o_ref.dtype)


def _kernel_multi_k(x_ref, w_ref, b_ref, o_ref, acc_ref, *, compute_dtype):
    # acc_ref: (tm, tn) f32 resident across the K (last, "arbitrary") grid axis.
    k = pl.program_id(2)

    @pl.when(k == 0)
    def _():
        acc_ref[...] = jnp.zeros_like(acc_ref)

    acc_ref[...] += jnp.dot(x_ref[...].astype(compute_dtype), w_ref[...],
                            preferred_element_type=jnp.float32)

    @pl.when(k == pl.num_programs(2) - 1)
    def _():
        # Bias + ReLU epilogue in f32, once per output tile.
        o_ref[...] = jnp.maximum(acc_ref[...] + b_ref[...], 0.0).astype(o_ref.dtype)


# ---------------------------------------------------------------------------
# Wrapper
# ---------------------------------------------------------------------------

def prepare_linear_block_params(w_t, b, *, compute_dtype=jnp.bfloat16,
                                tn=None, tk=None):
    """One-time weight prep (cast + pad), hoisted out of the per-call hot path.

    w_t: (D_in, D_out)   -- transpose of torch nn.Linear's weight
    b:   (D_out,)
    """
    K, N = w_t.shape
    assert b.shape == (N,)

    budget = _vmem_budget_bytes()
    _, tn_cap, tk_cap = _tile_caps(budget)
    if tn is None:
        tn = _pick_tile(N, tn_cap)
    if tk is None:
        tk = _pick_tile(K, tk_cap)
    assert tn % 128 == 0 and tk % 128 == 0

    Np = _round_up(N, tn)
    Kp = _round_up(K, tk)

    wp = w_t.astype(compute_dtype)
    bp = b.astype(jnp.float32).reshape(1, N)
    if (Kp, Np) != (K, N):
        wp = jnp.pad(wp, ((0, Kp - K), (0, Np - N)))
    if Np != N:
        bp = jnp.pad(bp, ((0, 0), (0, Np - N)))

    return dict(wp=wp, bp=bp, K=K, N=N, Kp=Kp, Np=Np, tn=tn, tk=tk,
                compute_dtype=compute_dtype)


def linear_block_forward(x, params, *, tm=None, out_dtype=None):
    """relu(x @ W.T + b) with a tiled, pipelined Pallas TPU matmul kernel."""
    M, K = x.shape
    assert K == params["K"], (K, params["K"])
    N, Kp, Np = params["N"], params["Kp"], params["Np"]
    tn, tk = params["tn"], params["tk"]
    compute_dtype = params["compute_dtype"]
    wp, bp = params["wp"], params["bp"]
    if out_dtype is None:
        # Pass out_dtype=compute_dtype (bf16) when the consumer tolerates it:
        # halves HBM writeback and the double-buffered out tile in VMEM.
        out_dtype = x.dtype

    budget = _vmem_budget_bytes()
    tm_cap, _, _ = _tile_caps(budget)
    if tm is None:
        tm = _round_up(M, 8) if M < 128 else _pick_tile(M, tm_cap)
    assert tm % 8 == 0

    Mp = _round_up(M, tm)
    n_i, n_j, n_k = Mp // tm, Np // tn, Kp // tk

    # Guarantee >=2 "parallel" grid blocks so both TensorCores run on v7x.
    if n_i == 1 and n_j == 1 and tn % 256 == 0:
        tn //= 2
        n_j = Np // tn

    # Cast x in the wrapper only when it is re-streamed many times; otherwise
    # cast in-kernel and skip a full HBM read+write pass over x.
    cast_in_wrapper = (x.dtype != compute_dtype) and n_j > 2
    x_isz = jnp.dtype(compute_dtype if cast_in_wrapper else x.dtype).itemsize
    w_isz = jnp.dtype(compute_dtype).itemsize
    o_isz = jnp.dtype(out_dtype).itemsize

    # Shrink tm if the double-buffered working set would exceed the budget.
    def _footprint(tm_):
        f = 2 * (tm_ * tk * x_isz + tk * tn * w_isz + tn * 4 + tm_ * tn * o_isz)
        if n_k > 1:
            f += tm_ * tn * 4
        return f

    while tm > 128 and tm % 2 == 0 and _footprint(tm) > budget:
        tm //= 2
    Mp = _round_up(M, tm)
    n_i = Mp // tm

    xp = x.astype(compute_dtype) if cast_in_wrapper else x
    if (Mp, Kp) != (M, K):
        xp = jnp.pad(xp, ((0, Mp - M), (0, Kp - K)))

    # Honest HBM traffic estimate: x is streamed n_j times, w/b n_i times.
    cost = pl.CostEstimate(
        flops=2 * Mp * Np * Kp,
        transcendentals=0,
        bytes_accessed=int(Mp * Kp * x_isz * n_j
                           + Kp * Np * w_isz * n_i
                           + Np * 4 * n_i
                           + Mp * Np * o_isz),
    )
    sem = ("parallel", "parallel") if n_k == 1 else ("parallel", "parallel", "arbitrary")
    compiler_params = pltpu.CompilerParams(
        dimension_semantics=sem,
        vmem_limit_bytes=int(budget),
    )

    if n_k == 1:
        out = pl.pallas_call(
            functools.partial(_kernel_single_k, compute_dtype=compute_dtype),
            out_shape=jax.ShapeDtypeStruct((Mp, Np), out_dtype),
            grid_spec=pltpu.PrefetchScalarGridSpec(
                num_scalar_prefetch=0,
                grid=(n_i, n_j),
                in_specs=[
                    pl.BlockSpec((tm, tk), lambda i, j: (i, 0)),   # x tile
                    pl.BlockSpec((tk, tn), lambda i, j: (0, j)),   # w_t tile
                    pl.BlockSpec((1, tn), lambda i, j: (0, j)),    # bias tile
                ],
                out_specs=pl.BlockSpec((tm, tn), lambda i, j: (i, j)),
            ),
            compiler_params=compiler_params,
            cost_estimate=cost,
        )(xp, wp, bp)
    else:
        out = pl.pallas_call(
            functools.partial(_kernel_multi_k, compute_dtype=compute_dtype),
            out_shape=jax.ShapeDtypeStruct((Mp, Np), out_dtype),
            grid_spec=pltpu.PrefetchScalarGridSpec(
                num_scalar_prefetch=0,
                grid=(n_i, n_j, n_k),
                in_specs=[
                    pl.BlockSpec((tm, tk), lambda i, j, k: (i, k)),
                    pl.BlockSpec((tk, tn), lambda i, j, k: (k, j)),
                    pl.BlockSpec((1, tn), lambda i, j, k: (0, j)),
                ],
                out_specs=pl.BlockSpec((tm, tn), lambda i, j, k: (i, j)),
                scratch_shapes=[pltpu.VMEM((tm, tn), jnp.float32)],
            ),
            compiler_params=compiler_params,
            cost_estimate=cost,
        )(xp, wp, bp)

    if (Mp, Np) != (M, N):
        out = out[:M, :N]
    return out


def linear_block(x, w_t, b, **kwargs):
    """Convenience one-shot wrapper (prep + forward). Prefer preparing once."""
    return linear_block_forward(x, prepare_linear_block_params(w_t, b), **kwargs)


if __name__ == "__main__":
    # Small shapes consistent with nn.Linear(input_dim, output_dim):
    batch, input_dim, output_dim = 8, 32, 64

    key = jax.random.PRNGKey(0)
    kx, kw, kb = jax.random.split(key, 3)

    # Deterministic parameter init (synthetic, mimics Linear's uniform range).
    bound = 1.0 / (input_dim ** 0.5)
    w = jax.random.uniform(kw, (output_dim, input_dim), jnp.float32, -bound, bound)
    b = jax.random.uniform(kb, (output_dim,), jnp.float32, -bound, bound)
    x = jax.random.normal(kx, (batch, input_dim), jnp.float32)

    params = prepare_linear_block_params(w.T, b)       # one-time weight prep
    out = jax.block_until_ready(linear_block_forward(x, params))

    # Reference 1: same bf16 operand cast + f32 accumulation (tight tolerance).
    ref_bf16 = jnp.maximum(
        jnp.dot(x.astype(jnp.bfloat16), w.T.astype(jnp.bfloat16),
                preferred_element_type=jnp.float32) + b, 0.0)
    # Reference 2: full-f32 semantics of the PyTorch module (loose tolerance).
    ref_f32 = jnp.maximum(x @ w.T + b, 0.0)

    assert out.shape == (batch, output_dim)
    assert jnp.allclose(out, ref_bf16, atol=1e-4, rtol=1e-4)
    assert jnp.allclose(out, ref_f32, atol=5e-2, rtol=5e-2)

    # Also exercise the multi-K accumulator path + M/N/K padding with forced
    # small tiles (still tiny shapes).
    M2, K2, N2 = 40, 300, 200
    k2x, k2w, k2b = jax.random.split(jax.random.PRNGKey(1), 3)
    w2 = jax.random.normal(k2w, (N2, K2), jnp.float32) * 0.05
    b2 = jax.random.normal(k2b, (N2,), jnp.float32)
    x2 = jax.random.normal(k2x, (M2, K2), jnp.float32)

    params2 = prepare_linear_block_params(w2.T, b2, tn=128, tk=128)
    out2 = jax.block_until_ready(linear_block_forward(x2, params2, tm=8))
    ref2 = jnp.maximum(
        jnp.dot(x2.astype(jnp.bfloat16), w2.T.astype(jnp.bfloat16),
                preferred_element_type=jnp.float32) + b2, 0.0)
    assert out2.shape == (M2, N2)
    assert jnp.allclose(out2, ref2, atol=1e-3, rtol=1e-3)

    print("KERNEL_OK")
</pallas_src>

<mosaic_0001>
module attributes {stable_mosaic.version = 11 : i64} {
  func.func @_kernel_single_k(%arg0: i32, %arg1: i32, %arg2: memref<8x128xf32, #tpu.memory_space<vmem>>, %arg3: memref<128x128xbf16, #tpu.memory_space<vmem>>, %arg4: memref<1x128xf32, #tpu.memory_space<vmem>>, %arg5: memref<8x128xf32, #tpu.memory_space<vmem>>) attributes {dimension_semantics = [#tpu.dimension_semantics<parallel>, #tpu.dimension_semantics<parallel>], iteration_bounds = array<i64: 1, 1>, scalar_prefetch = 0 : i64, scratch_operands = 0 : i64, tpu.core_type = #tpu.core_type<tc>, window_params = [{transform_indices = @transform_0, window_bounds = array<i64: 8, 128>}, {transform_indices = @transform_1, window_bounds = array<i64: 128, 128>}, {transform_indices = @transform_2, window_bounds = array<i64: 1, 128>}, {transform_indices = @transform_3, window_bounds = array<i64: 8, 128>}]} {
    %c0 = arith.constant 0 : index
    %c0_0 = arith.constant 0 : index
    %0 = vector.load %arg2[%c0, %c0_0] : memref<8x128xf32, #tpu.memory_space<vmem>>, vector<8x128xf32>
    %1 = arith.truncf %0 : vector<8x128xf32> to vector<8x128xbf16>
    %c0_1 = arith.constant 0 : index
    %c0_2 = arith.constant 0 : index
    %2 = vector.load %arg3[%c0_1, %c0_2] : memref<128x128xbf16, #tpu.memory_space<vmem>>, vector<128x128xbf16>
    %cst = arith.constant dense<0.000000e+00> : vector<8x128xf32>
    %3 = tpu.matmul %1, %2, %cst {dimension_numbers = #tpu.dot_dimension_numbers<[1], [0], [0], [1], [0, 0, 1, 1], [], []>} : vector<8x128xbf16>, vector<128x128xbf16>, vector<8x128xf32> -> vector<8x128xf32>
    %c0_3 = arith.constant 0 : index
    %c0_4 = arith.constant 0 : index
    %4 = vector.load %arg4[%c0_3, %c0_4] : memref<1x128xf32, #tpu.memory_space<vmem>>, vector<1x128xf32>
    %5 = vector.broadcast %4 : vector<1x128xf32> to vector<8x128xf32>
    %6 = arith.addf %3, %5 : vector<8x128xf32>
    %cst_5 = arith.constant 0.000000e+00 : f32
    %7 = vector.broadcast %cst_5 : f32 to vector<8x128xf32>
    %8 = arith.maximumf %6, %7 : vector<8x128xf32>
    %c0_6 = arith.constant 0 : index
    %c0_7 = arith.constant 0 : index
    %9 = vector.load %arg5[%c0_6, %c0_7] : memref<8x128xf32, #tpu.memory_space<vmem>>, vector<8x128xf32>
    tpu.vector_store %arg5[%c0_6, %c0_7], %8 {strides = array<i32>} : memref<8x128xf32, #tpu.memory_space<vmem>>, vector<8x128xf32>,
    return
  }
  func.func @transform_0(%arg0: i32, %arg1: i32) -> (i32, i32) {
    %c0_i32 = arith.constant 0 : i32
    %c0_i32_0 = arith.constant 0 : i32
    return %arg0, %c0_i32 : i32, i32
  }
  func.func @transform_1(%arg0: i32, %arg1: i32) -> (i32, i32) {
    %c0_i32 = arith.constant 0 : i32
    %c0_i32_0 = arith.constant 0 : i32
    return %c0_i32, %arg1 : i32, i32
  }
  func.func @transform_2(%arg0: i32, %arg1: i32) -> (i32, i32) {
    %c0_i32 = arith.constant 0 : i32
    %c0_i32_0 = arith.constant 0 : i32
    return %c0_i32, %arg1 : i32, i32
  }
  func.func @transform_3(%arg0: i32, %arg1: i32) -> (i32, i32) {
    %c0_i32 = arith.constant 0 : i32
    return %arg0, %arg1 : i32, i32
  }
}

</mosaic_0001>

<llo_original>
// kernel: tpu_custom_call.1
$region0: #{tpu_custom_call.1}
  #allocation0 [shape = 'u32[]', space=smem, size = 0x4, offset = 0x4, fixed_abs, tag = 'smem constant byte address 0x4 - core index']
  #allocation1 [shape = 'u32[72,128]{1,0:T(1,128)}', space=vmem, size = 0x9000, scoped, tag = 'internal scratch']
  %s0 = inlined_call_operand.hbm [shape: f32[8,128], index: 0, kind: input, shape index: {}]
  %s1 = inlined_call_operand.hbm [shape: bf16[128,128], index: 1, kind: input, shape index: {}]
  %s2 = inlined_call_operand.vmem [shape: f32[1,128], index: 2, kind: input, shape index: {}]
  %s3 = inlined_call_operand.hbm [shape: f32[8,128], index: 3, kind: output, shape index: {}]
  %s4 = sld [smem:[#allocation0]]
  $region30: #{tpu_custom_call.1} parent=0
    _
  %s6 = ssub.s32 1, %s4
  %s7 = scalar_select 0, %s6, %s4
  $region1: #{tpu_custom_call.1} parent=0
    #allocation2 [shape = 'u8[4096]{0}', space=vmem, size = 0x1000, scoped, tag = 'input window, operand 0, single buffered']
    #allocation3 [shape = 's32[1]{0}', space=sflag, size = 0x4, scoped, tag = 'scoped memory for tpu_custom_call.1']
    #allocation4 [shape = 's32[1]{0}', space=sflag, size = 0x4, scoped, tag = 'scoped memory for tpu_custom_call.1']
    #allocation5 [shape = 'u8[32768]{0}', space=vmem, size = 0x8000, scoped, tag = 'input window, operand 1, single buffered']
    #allocation6 [shape = 's32[1]{0}', space=sflag, size = 0x4, scoped, tag = 'scoped memory for tpu_custom_call.1']
    #allocation7 [shape = 'u8[4096]{0}', space=vmem, size = 0x1000, scoped, tag = 'output window, operand 0, single buffered']
    %8 = vsyncpa [#allocation3], 0
    %9 = vsyncpa [#allocation6], 0
    %10 = vsyncpa [#allocation4], 0
    // Predicated region
    $region2: #{tpu_custom_call.1} parent=1 // pred_check
      _
    $region3: #{tpu_custom_call.1} parent=1 // pred_check_branch
      %12 = sbr.rel (0) target = $region5
    $region4: #{tpu_custom_call.1} parent=1 // pred_region
      %14 = vsyncadd [#allocation3], 0
      %s16 = sshll.u32 %s0, 4
      %s17 = int_to_ptr.hbm [resolvable:$true] %s16
      %s18 = sshll.u32 [#allocation2], 4
      %s19 = int_to_ptr.vmem [resolvable:$true] %s18
      %21 = dma.hbm_to_vmem [thread:$0]  %s17, 128, %s19, [#allocation3]
    $region5: #{tpu_custom_call.1} parent=1 // pred_fallthru
      _
    // Predicated region
    $region6: #{tpu_custom_call.1} parent=1 // pred_check
      _
    $region7: #{tpu_custom_call.1} parent=1 // pred_check_branch
      %23 = sbr.rel (0) target = $region9
    $region8: #{tpu_custom_call.1} parent=1 // pred_region
      %25 = vsyncadd [#allocation6], 0
      %s26 = sshll.u32 %s1, 4
      %s27 = int_to_ptr.hbm [resolvable:$true] %s26
      %s28 = sshll.u32 [#allocation5], 4
      %s29 = int_to_ptr.vmem [resolvable:$true] %s28
      %34 = dma.hbm_to_vmem [thread:$0]  %s27, 1024, %s29, [#allocation6], 64, 64, 4
    $region9: #{tpu_custom_call.1} parent=1 // pred_fallthru
      _
    // Predicated region
    $region10: #{tpu_custom_call.1} parent=1 // pred_check
      _
    $region11: #{tpu_custom_call.1} parent=1 // pred_check_branch
      %36 = sbr.rel (0) target = $region13
    $region12: #{tpu_custom_call.1} parent=1 // pred_region
      _
    $region13: #{tpu_custom_call.1} parent=1 // pred_fallthru
      _
    // Predicated region
    $region14: #{tpu_custom_call.1} parent=1 // pred_check
      _
    $region15: #{tpu_custom_call.1} parent=1 // pred_check_branch
      %38 = sbr.rel (0) target = $region17
    $region16: #{tpu_custom_call.1} parent=1 // pred_region
      %40 = dma.done [#allocation3], 128
    $region17: #{tpu_custom_call.1} parent=1 // pred_fallthru
      _
    // Predicated region
    $region18: #{tpu_custom_call.1} parent=1 // pred_check
      _
    $region19: #{tpu_custom_call.1} parent=1 // pred_check_branch
      %42 = sbr.rel (0) target = $region21
    $region20: #{tpu_custom_call.1} parent=1 // pred_region
      %44 = dma.done [#allocation6], 1024
    $region21: #{tpu_custom_call.1} parent=1 // pred_fallthru
      _
    %v45 = vld [vmem:[#allocation2] sm:$0xff]
    %v46 = vpack.c.bf16 %v45, %v45
    %v47 = vld [vmem:[#allocation5] sm:$0xf]
    %v48 = vld [vmem:[#allocation5 + $0x4] sm:$0xf]
    %v49 = vld [vmem:[#allocation5 + $0x8] sm:$0xf]
    %v50 = vld [vmem:[#allocation5 + $0xc] sm:$0xf]
    %v51 = vld [vmem:[#allocation5 + $0x10] sm:$0xf]
    %v52 = vld [vmem:[#allocation5 + $0x14] sm:$0xf]
    %v53 = vld [vmem:[#allocation5 + $0x18] sm:$0xf]
    %v54 = vld [vmem:[#allocation5 + $0x1c] sm:$0xf]
    %v55 = vld [vmem:[#allocation5 + $0x20] sm:$0xf]
    %v56 = vld [vmem:[#allocation5 + $0x24] sm:$0xf]
    %v57 = vld [vmem:[#allocation5 + $0x28] sm:$0xf]
    %v58 = vld [vmem:[#allocation5 + $0x2c] sm:$0xf]
    %v59 = vld [vmem:[#allocation5 + $0x30] sm:$0xf]
    %v60 = vld [vmem:[#allocation5 + $0x34] sm:$0xf]
    %v61 = vld [vmem:[#allocation5 + $0x38] sm:$0xf]
    %v62 = vld [vmem:[#allocation5 + $0x3c] sm:$0xf]
    %v63 = vld [vmem:[%s2] sm:$0x1]
    %v65 = vperm.slane %v63, 0
    %v83 = vunpack.c.l.b16 %v47
    %v84 = vunpack.c.l.b16 %v48
    %v85 = vunpack.c.l.b16 %v49
    %v86 = vunpack.c.l.b16 %v50
    %v87 = vunpack.c.l.b16 %v51
    %v88 = vunpack.c.l.b16 %v52
    %v89 = vunpack.c.l.b16 %v53
    %v90 = vunpack.c.l.b16 %v54
    %v91 = vunpack.c.l.b16 %v55
    %v92 = vunpack.c.l.b16 %v56
    %v93 = vunpack.c.l.b16 %v57
    %v94 = vunpack.c.l.b16 %v58
    %v95 = vunpack.c.l.b16 %v59
    %v96 = vunpack.c.l.b16 %v60
    %v97 = vunpack.c.l.b16 %v61
    %v98 = vunpack.c.l.b16 %v62
    %v99 = vpack.c.b16 %v84, %v83
    %v100 = vpack.c.b16 %v86, %v85
    %v101 = vpack.c.b16 %v88, %v87
    %v102 = vpack.c.b16 %v90, %v89
    %v103 = vpack.c.b16 %v92, %v91
    %v104 = vpack.c.b16 %v94, %v93
    %v105 = vpack.c.b16 %v96, %v95
    %v106 = vpack.c.b16 %v98, %v97
    %115 = vmatpush.bf16.msra.mxu0 %v106
    %116 = vmatpush.bf16.msra.mxu0 %v105
    %117 = vmatpush.bf16.msra.mxu0 %v104
    %118 = vmatpush.bf16.msra.mxu0 %v103
    %119 = vmatpush.bf16.msra.mxu0 %v102
    %120 = vmatpush.bf16.msra.mxu0 %v101
    %121 = vmatpush.bf16.msra.mxu0 %v100
    %122 = vmatpush.bf16.msra.mxu0 %v99
    %123 = vmatmul.bf16.gmra.mxu0 %v46
    %v124 = vpop.f32.mrf.mxu0
    %v125 = vadd.f32 %v65, %v124
    %v126 = vpop.f32.mrf.mxu0
    %127 = vdwg.mxu0
    %v128 = vmax.f32 %v125, 0.0
    %129 = vst [vmem:[#allocation7] sm:$0xff] %v128
    // Predicated region
    $region22: #{tpu_custom_call.1} parent=1 // pred_check
      _
    $region23: #{tpu_custom_call.1} parent=1 // pred_check_branch
      %131 = sbr.rel (0) target = $region25
    $region24: #{tpu_custom_call.1} parent=1 // pred_region
      %133 = vsyncadd [#allocation4], 0
      %s135 = sshll.u32 [#allocation7], 4
      %s136 = int_to_ptr.vmem [resolvable:$true] %s135
      %s137 = sshll.u32 %s3, 4
      %s138 = int_to_ptr.hbm [resolvable:$true] %s137
      %140 = dma.vmem_to_hbm [thread:$0]  %s136, 128, %s138, [#allocation4]
    $region25: #{tpu_custom_call.1} parent=1 // pred_fallthru
      _
    // Predicated region
    $region26: #{tpu_custom_call.1} parent=1 // pred_check
      _
    $region27: #{tpu_custom_call.1} parent=1 // pred_check_branch
      %142 = sbr.rel (0) target = $region29
    $region28: #{tpu_custom_call.1} parent=1 // pred_region
      %144 = dma.done [#allocation4], 128
    $region29: #{tpu_custom_call.1} parent=1 // pred_fallthru
      _
    %145 = vsyncpa [#allocation3], 1
    %146 = vsyncpa [#allocation6], 1
    %147 = vsyncpa [#allocation4], 1

</llo_original>
